<compile_context>
chip_gen: v6e
topology: v6e:2x2x1
jax: 0.10.0
libtpu: 0.0.40
codegen_flags: <defaults>
</compile_context>

<pallas_src>
import jax
import jax.numpy as jnp
from jax import lax
from jax.experimental import pallas as pl
from jax.experimental.pallas import tpu as pltpu


# ---------------------------------------------------------------------------
# PE table construction (replicates PositionalEconding.__init__ exactly).
# ---------------------------------------------------------------------------
def make_pos_encoding(max_coding_len: int, num_hidden: int) -> jnp.ndarray:
    pos = jnp.arange(max_coding_len, dtype=jnp.float32).reshape(-1, 1)   # (L, 1)
    i = jnp.arange(0, num_hidden, 2, dtype=jnp.float32)                  # (H/2,)
    angle = pos / (10000.0 ** (i / num_hidden))                          # (L, H/2)
    pe = jnp.zeros((max_coding_len, num_hidden), dtype=jnp.float32)
    pe = pe.at[:, 0::2].set(jnp.sin(angle))
    pe = pe.at[:, 1::2].set(jnp.cos(angle))
    return pe[None, :, :]                                                # (1, L, H)


# ---------------------------------------------------------------------------
# Kernel: one flattened (tb, tl) tile of x plus the shared (1, tl) PE tile.
# ---------------------------------------------------------------------------
def _pe_add_kernel(x_ref, pe_ref, o_ref):
    # PE broadcasts over the batch sublanes; cast keeps bf16/f16 inputs legal.
    o_ref[...] = (x_ref[...] + pe_ref[...]).astype(o_ref.dtype)


_BLOCK_BYTE_CAP = 4 << 20    # per-block cap: 2 x-in + 2 out buffers ~= 16 MiB VMEM
_MIN_GRID_STEPS = 8          # keep the pipeline (and both v7x TCs) busy
_VMEM_LIMIT = 64 << 20       # explicit scoped-VMEM limit (v5e default 16 MiB is too low)


def _sublane_multiple(dtype) -> int:
    # f32 -> 8, bf16/f16 -> 16, int8/fp8 -> 32 (sublane packing granularity).
    return max(8, 32 // jnp.dtype(dtype).itemsize)


def _pick_lane_tile(flat: int, itemsize: int, min_rows: int) -> int:
    """Largest multiple of 128 dividing `flat` whose tile fits the byte cap.

    Only called when flat % 128 == 0.  Prefers tl == flat (fully contiguous
    row DMAs) whenever a full row fits the cap at the minimum row count.
    """
    max_lanes = max(128, _BLOCK_BYTE_CAP // (itemsize * min_rows))
    if flat <= max_lanes:
        return flat
    best = 128
    n128 = flat // 128
    d = 1
    while d * d <= n128:
        if n128 % d == 0:
            for q in (d, n128 // d):
                tl = q * 128
                if best < tl <= max_lanes:
                    best = tl
        d += 1
    return best


def _pick_batch_tile(batch: int, tl: int, itemsize: int, sub: int, n_l: int) -> int:
    """Batch-row tile: sublane-aligned, under the byte cap, with >= _MIN_GRID_STEPS
    total grid steps when the problem is big enough."""
    if batch <= sub:
        return batch                                 # full-extent dim is always legal
    cap_rows = max(sub, (_BLOCK_BYTE_CAP // (itemsize * tl)) // sub * sub)
    tb = min(cap_rows, max(sub, (batch // sub) * sub))
    # Shrink tb (multiples of `sub`) until the grid has enough steps to pipeline
    # and to feed both v7x TensorCores.
    while n_l * pl.cdiv(batch, tb) < _MIN_GRID_STEPS and tb > sub:
        new_tb = max(sub, (tb // 2) // sub * sub)
        if new_tb == tb:
            break
        tb = new_tb
    return tb


# ---------------------------------------------------------------------------
# Wrapper.
# ---------------------------------------------------------------------------
def positional_encoding_forward(x: jnp.ndarray, pe_full: jnp.ndarray) -> jnp.ndarray:
    """x: (B, S, H); pe_full: (1, max_len, H). Returns x + pe[:, :S, :]."""
    B, S, H = x.shape
    _, max_len, H_pe = pe_full.shape
    assert H == H_pe, "hidden size mismatch between x and PE table"
    assert S <= max_len, "sequence length exceeds max_coding_len"

    flat = S * H
    itemsize = jnp.dtype(x.dtype).itemsize
    sub = _sublane_multiple(x.dtype)
    min_rows = min(sub, B)

    if flat % 128 == 0:
        # Lane-dense path: un-sliced PE table; the BlockSpec windows the first
        # S*H flattened lanes via the lane-tile grid axis (no wrapper-side copy).
        pe_src = pe_full.astype(x.dtype).reshape(1, max_len * H)
        tl = _pick_lane_tile(flat, itemsize, min_rows)
    else:
        # Full-row path: a block last dim equal to the full array extent is
        # always legal, so stores stay dense in bulk even when S*H % 128 != 0.
        # PE is sliced once (tiny copy) so its flattened layout matches x's rows.
        # TODO(synk): very large non-128-divisible S*H rows are not lane-split;
        # they rely on the raised vmem limit instead of the 4 MiB block cap.
        pe_src = lax.slice(pe_full, (0, 0, 0), (1, S, H)).astype(x.dtype).reshape(1, flat)
        tl = flat

    n_l = pl.cdiv(flat, tl)
    tb = _pick_batch_tile(B, tl, itemsize, sub, n_l)
    n_b = pl.cdiv(B, tb)

    # Free, contiguous reshape for the default row-major layout.
    x_flat = x.reshape(B, flat)

    out_flat = pl.pallas_call(
        _pe_add_kernel,
        out_shape=jax.ShapeDtypeStruct((B, flat), x.dtype),
        grid_spec=pltpu.PrefetchScalarGridSpec(
            num_scalar_prefetch=0,
            # Batch axis innermost -> the PE block index (0, l) is constant
            # across the inner loop, so the PE tile stays resident (no re-DMA
            # per batch tile).
            grid=(n_l, n_b),
            in_specs=[
                pl.BlockSpec((tb, tl), lambda l, b: (b, l)),   # x tile
                pl.BlockSpec((1, tl), lambda l, b: (0, l)),    # shared PE tile
            ],
            out_specs=pl.BlockSpec((tb, tl), lambda l, b: (b, l)),
        ),
        compiler_params=pltpu.CompilerParams(
            dimension_semantics=("parallel", "parallel"),
            vmem_limit_bytes=_VMEM_LIMIT,
        ),
        # Write the result into x's HBM buffer; full benefit when the caller
        # donates x at a jit boundary (correct either way — XLA copies if needed).
        input_output_aliases={0: 0},
    )(x_flat, pe_src)

    return out_flat.reshape(B, S, H)


if __name__ == "__main__":
    # Small shapes consistent with the module: batch=2, seq=8, hidden=32.
    B, S, H = 2, 8, 32
    max_coding_len = 16

    key = jax.random.PRNGKey(0)
    x = jax.random.normal(key, (B, S, H), dtype=jnp.float32)

    pe_full = make_pos_encoding(max_coding_len, H)          # (1, 16, 32)

    # Reference computed first (plain-JAX mirror of the PyTorch forward).
    ref = x + pe_full[:, :S, :]

    out = positional_encoding_forward(x, pe_full)
    out = jax.block_until_ready(out)

    assert out.shape == (B, S, H)
    assert jnp.allclose(out, ref, atol=1e-6), "mismatch vs reference"

    print("KERNEL_OK")
</pallas_src>

<mosaic_0001>
module attributes {stable_mosaic.version = 11 : i64} {
  func.func @_pe_add_kernel(%arg0: i32, %arg1: i32, %arg2: memref<2x256xf32, #tpu.memory_space<vmem>>, %arg3: memref<1x256xf32, #tpu.memory_space<vmem>>, %arg4: memref<2x256xf32, #tpu.memory_space<vmem>>) attributes {dimension_semantics = [#tpu.dimension_semantics<parallel>, #tpu.dimension_semantics<parallel>], iteration_bounds = array<i64: 1, 1>, scalar_prefetch = 0 : i64, scratch_operands = 0 : i64, tpu.core_type = #tpu.core_type<tc>, window_params = [{transform_indices = @transform_0, window_bounds = array<i64: 2, 256>}, {transform_indices = @transform_1, window_bounds = array<i64: 1, 256>}, {transform_indices = @transform_2, window_bounds = array<i64: 2, 256>}]} {
    %c0 = arith.constant 0 : index
    %c0_0 = arith.constant 0 : index
    %0 = vector.load %arg2[%c0, %c0_0] : memref<2x256xf32, #tpu.memory_space<vmem>>, vector<2x256xf32>
    %c0_1 = arith.constant 0 : index
    %c0_2 = arith.constant 0 : index
    %1 = vector.load %arg3[%c0_1, %c0_2] : memref<1x256xf32, #tpu.memory_space<vmem>>, vector<1x256xf32>
    %2 = vector.broadcast %1 : vector<1x256xf32> to vector<2x256xf32>
    %3 = arith.addf %0, %2 : vector<2x256xf32>
    %c0_3 = arith.constant 0 : index
    %c0_4 = arith.constant 0 : index
    %4 = vector.load %arg4[%c0_3, %c0_4] : memref<2x256xf32, #tpu.memory_space<vmem>>, vector<2x256xf32>
    tpu.vector_store %arg4[%c0_3, %c0_4], %3 {strides = array<i32>} : memref<2x256xf32, #tpu.memory_space<vmem>>, vector<2x256xf32>,
    return
  }
  func.func @transform_0(%arg0: i32, %arg1: i32) -> (i32, i32) {
    %c0_i32 = arith.constant 0 : i32
    return %arg1, %arg0 : i32, i32
  }
  func.func @transform_1(%arg0: i32, %arg1: i32) -> (i32, i32) {
    %c0_i32 = arith.constant 0 : i32
    %c0_i32_0 = arith.constant 0 : i32
    return %c0_i32, %arg0 : i32, i32
  }
  func.func @transform_2(%arg0: i32, %arg1: i32) -> (i32, i32) {
    %c0_i32 = arith.constant 0 : i32
    return %arg1, %arg0 : i32, i32
  }
}

</mosaic_0001>

<llo_original>
// kernel: tpu_custom_call.1
$region0: #{tpu_custom_call.1}
  #allocation0 [shape = 'u32[]', space=smem, size = 0x4, offset = 0x4, fixed_abs, tag = 'smem constant byte address 0x4 - core index']
  #allocation1 [shape = 'u32[144,128]{1,0:T(1,128)}', space=vmem, size = 0x12000, scoped, tag = 'internal scratch']
  %s0 = inlined_call_operand.hbm [shape: f32[2,256], index: 0, kind: input, shape index: {}, may-alias: {0,2}]
  %s1 = inlined_call_operand.vmem [shape: f32[1,512], index: 1, kind: input, shape index: {}]
  %s2 = inlined_call_operand.hbm [shape: f32[2,256], index: 2, kind: output, shape index: {}, may-alias: {0,2}]
  %s3 = sld [smem:[#allocation0]]
  $region22: #{tpu_custom_call.1} parent=0
    _
  %s5 = ssub.s32 1, %s3
  %s6 = scalar_select 0, %s5, %s3
  $region1: #{tpu_custom_call.1} parent=0
    #allocation2 [shape = 'u8[2048]{0}', space=vmem, size = 0x800, scoped, tag = 'input window, operand 0, single buffered']
    #allocation3 [shape = 's32[1]{0}', space=sflag, size = 0x4, scoped, tag = 'scoped memory for tpu_custom_call.1']
    #allocation4 [shape = 's32[1]{0}', space=sflag, size = 0x4, scoped, tag = 'scoped memory for tpu_custom_call.1']
    #allocation5 [shape = 'u8[2048]{0}', space=vmem, size = 0x800, scoped, tag = 'output window, operand 0, single buffered']
    %7 = vsyncpa [#allocation3], 0
    %8 = vsyncpa [#allocation4], 0
    // Predicated region
    $region2: #{tpu_custom_call.1} parent=1 // pred_check
      _
    $region3: #{tpu_custom_call.1} parent=1 // pred_check_branch
      %10 = sbr.rel (0) target = $region5
    $region4: #{tpu_custom_call.1} parent=1 // pred_region
      %s12 = ssub.s32 64, 64
      %13 = vsyncadd [#allocation3], %s12
      %s15 = sshll.u32 [#allocation2], 4
      %s16 = int_to_ptr.vmem [resolvable:$true] %s15
      %18 = dma.hbm_to_vmem [thread:$0]  %s0, 64, %s16, [#allocation3]
    $region5: #{tpu_custom_call.1} parent=1 // pred_fallthru
      _
    // Predicated region
    $region6: #{tpu_custom_call.1} parent=1 // pred_check
      _
    $region7: #{tpu_custom_call.1} parent=1 // pred_check_branch
      %20 = sbr.rel (0) target = $region9
    $region8: #{tpu_custom_call.1} parent=1 // pred_region
      _
    $region9: #{tpu_custom_call.1} parent=1 // pred_fallthru
      _
    // Predicated region
    $region10: #{tpu_custom_call.1} parent=1 // pred_check
      _
    $region11: #{tpu_custom_call.1} parent=1 // pred_check_branch
      %22 = sbr.rel (0) target = $region13
    $region12: #{tpu_custom_call.1} parent=1 // pred_region
      %23 = dma.done [#allocation3], 64
    $region13: #{tpu_custom_call.1} parent=1 // pred_fallthru
      _
    %v24 = vld [vmem:[#allocation2] sm:$0xf]
    %v25 = vld [vmem:[%s1] sm:$0x3]
    %v27 = vlaneseq
    %v28 = vshrl.u32 %v27, 7
    %v29 = vsub.s32 0, %v28
    %v30 = vrot.slane %v25, %v29
    %v31 = vlaneseq
    %v32 = vshrl.u32 %v31, 7
    %v33 = vsub.s32 1, %v32
    %v34 = vrot.slane %v25, %v33
    %v35 = vcombine.low %v30, %v34
    %v37 = vunpack.c.l.s4 1983009808
    %v38 = vunpack.c.0.s8 %v37
    %v39 = vlaneseq
    %v40 = vshrl.u32 %v39, 7
    %v41 = vsub.s32 %v38, %v40
    %v42 = vrot.slane %v35, %v41
    %v44 = vadd.f32 %v24, %v42
    %45 = vst [vmem:[#allocation5] sm:$0xf] %v44
    // Predicated region
    $region14: #{tpu_custom_call.1} parent=1 // pred_check
      _
    $region15: #{tpu_custom_call.1} parent=1 // pred_check_branch
      %47 = sbr.rel (0) target = $region17
    $region16: #{tpu_custom_call.1} parent=1 // pred_region
      %s49 = ssub.s32 64, 64
      %50 = vsyncadd [#allocation4], %s49
      %s52 = sshll.u32 [#allocation5], 4
      %s53 = int_to_ptr.vmem [resolvable:$true] %s52
      %55 = dma.vmem_to_hbm [thread:$0]  %s53, 64, %s2, [#allocation4]
    $region17: #{tpu_custom_call.1} parent=1 // pred_fallthru
      _
    // Predicated region
    $region18: #{tpu_custom_call.1} parent=1 // pred_check
      _
    $region19: #{tpu_custom_call.1} parent=1 // pred_check_branch
      %57 = sbr.rel (0) target = $region21
    $region20: #{tpu_custom_call.1} parent=1 // pred_region
      %58 = dma.done [#allocation4], 64
    $region21: #{tpu_custom_call.1} parent=1 // pred_fallthru
      _
    %59 = vsyncpa [#allocation3], 1
    %60 = vsyncpa [#allocation4], 1

</llo_original>
